<compile_context>
chip_gen: v7x
topology: tpu7x:2x2x1
jax: 0.10.0
libtpu: 0.0.40
codegen_flags: <defaults>
</compile_context>

<pallas_src>
import jax
import jax.numpy as jnp
from jax import lax
from jax.experimental import pallas as pl
from jax.experimental.pallas import tpu as pltpu


def _downconv_kernel(x_ref, wband_ref, bias_ref, out_ref, xpad_ref):
    # x_ref:     (NB, H, W*Cin)       f32 lane-dense activation block
    # wband_ref: (3, W*Cin, W*Cout)   bf16 width-banded weights (BN scale folded,
    #                                 output columns parity-major in w)
    # bias_ref:  (1, W*Cout)          f32 folded BN bias (tiled over w)
    # out_ref:   (NB, Ho, Wo*Cout)    f32 lane-dense output block
    # xpad_ref:  (NB, H+2, W*Cin)     bf16 scratch; rows 0 and H+1 are zero halo
    nb, H, WCin = x_ref.shape
    WCout = wband_ref.shape[2]
    _, Ho, WoCout = out_ref.shape
    M = nb * H

    # Zero only the two halo rows (2 rows/image -> negligible). Done per step
    # so the kernel stays correct when the "parallel" grid axis is sharded
    # across TensorCores (a program_id==0-only init never runs on core 1).
    zrow = jnp.zeros((nb, 1, WCin), jnp.bfloat16)
    xpad_ref[:, 0:1, :] = zrow
    xpad_ref[:, H + 1:H + 2, :] = zrow

    # In-kernel f32 -> bf16 cast + interior store (rows 1..H).
    xpad_ref[:, 1:H + 1, :] = x_ref[...].astype(jnp.bfloat16)

    # Conv as 3 row-shifted MXU matmuls against the width-banded weights.
    # Column taps and width zero-padding live inside the weight matrix, so
    # there are no column shifts / relayouts here.
    acc = jnp.zeros((M, WCout), jnp.float32)
    for ky in range(3):
        lhs = xpad_ref[:, ky:ky + H, :].reshape(M, WCin)
        acc = acc + jnp.dot(lhs, wband_ref[ky],
                            preferred_element_type=jnp.float32)

    # Fused BatchNorm bias (scale already folded into weights) + ReLU.
    y = jnp.maximum(acc + bias_ref[...], 0.0)                 # (M, W*Cout)

    # 2x2 max-pool, stride 2.
    # Width: columns are parity-major (all even w first, all odd w second),
    # so the pool is a max of the two contiguous lane halves.
    yw = jnp.maximum(y[:, :WoCout], y[:, WoCout:])            # (M, Wo*Cout)
    # Height: max over adjacent row pairs (lane dim untouched).
    out = jnp.max(yw.reshape(nb, Ho, 2, WoCout), axis=2)      # (NB, Ho, Wo*Cout)

    # Single dense lane-wide store.
    out_ref[...] = out.astype(out_ref.dtype)


def _pick_block_n(N, H, W, Cin, Cout, vmem_budget_bytes=40 * 1024 * 1024):
    """Largest batch block that keeps >= 2 grid steps (when possible) and fits
    the per-step VMEM budget (input/output double-buffered + scratch)."""
    divisors = [d for d in range(N, 0, -1) if N % d == 0]
    preferred = [d for d in divisors if N // d >= 2] or divisors
    per_image = (H * W * Cin * 4 * 2                   # f32 input block (2 bufs)
                 + (H + 2) * W * Cin * 2               # bf16 padded scratch
                 + (H // 2) * (W // 2) * Cout * 4 * 2)  # f32 output block (2 bufs)
    for d in preferred:
        if d * per_image <= vmem_budget_bytes:
            return d
    return 1


def down_conv_nhwc(x_nhwc, w_oihw, gamma, beta, running_mean, running_var,
                   eps=1e-5, block_n=None):
    """DownConv forward on NHWC input: (N,H,W,Cin) -> (N,H//2,W//2,Cout)."""
    N, H, W, Cin = x_nhwc.shape
    Cout = w_oihw.shape[0]
    assert H % 2 == 0 and W % 2 == 0, "MaxPool2d(2,2) needs even H and W"
    Ho, Wo = H // 2, W // 2
    WCin, WCout, WoCout = W * Cin, W * Cout, Wo * Cout

    if block_n is None:
        block_n = _pick_block_n(N, H, W, Cin, Cout)
    assert N % block_n == 0, "batch must be divisible by block_n"

    # ---- fold BN (inference) into the conv weights / bias, in f32 ----
    scale = gamma.astype(jnp.float32) / jnp.sqrt(
        running_var.astype(jnp.float32) + eps)                       # (Cout,)
    bias = beta.astype(jnp.float32) - running_mean.astype(jnp.float32) * scale
    w_fold = w_oihw.astype(jnp.float32) * scale[:, None, None, None]  # (Cout,Cin,3,3)
    wt = jnp.transpose(w_fold, (2, 3, 1, 0))                          # (ky,kx,Cin,Cout)

    # ---- width-banded weight matrix, output columns parity-major in w ----
    # band[ky, w'*Cin + cin, col(w,cout)] = wt[ky, w'-w+1, cin, cout]
    # for w' in {w-1, w, w+1} inside [0, W); width zero-padding is implicit.
    band = jnp.zeros((3, WCin, WCout), jnp.float32)
    for w in range(W):
        col0 = (w % 2) * WoCout + (w // 2) * Cout
        for kx in range(3):
            wp = w + kx - 1
            if 0 <= wp < W:
                band = band.at[:, wp * Cin:(wp + 1) * Cin,
                               col0:col0 + Cout].set(wt[:, kx])
    band = band.astype(jnp.bfloat16)

    bias_tiled = jnp.tile(bias, W).reshape(1, WCout)                  # f32

    # Lane-dense activation view (free reshape); bf16 cast happens in-kernel.
    x_lane = x_nhwc.astype(jnp.float32).reshape(N, H, WCin)

    cost = pl.CostEstimate(
        flops=2 * N * H * W * 9 * Cin * Cout,
        transcendentals=0,
        bytes_accessed=(N * H * W * Cin * 4          # f32 activations in
                        + 3 * WCin * WCout * 2       # bf16 banded weights
                        + WCout * 4                  # folded bias
                        + N * Ho * Wo * Cout * 4))   # f32 output

    out = pl.pallas_call(
        _downconv_kernel,
        out_shape=jax.ShapeDtypeStruct((N, Ho, WoCout), jnp.float32),
        grid=(N // block_n,),
        in_specs=[
            pl.BlockSpec((block_n, H, WCin), lambda b: (b, 0, 0)),
            pl.BlockSpec((3, WCin, WCout), lambda b: (0, 0, 0)),
            pl.BlockSpec((1, WCout), lambda b: (0, 0)),
        ],
        out_specs=pl.BlockSpec((block_n, Ho, WoCout), lambda b: (b, 0, 0)),
        scratch_shapes=[pltpu.VMEM((block_n, H + 2, WCin), jnp.bfloat16)],
        compiler_params=pltpu.CompilerParams(
            dimension_semantics=("parallel",),        # batch blocks independent
            vmem_limit_bytes=48 * 1024 * 1024),
        cost_estimate=cost,
    )(x_lane, band, bias_tiled)

    return out.reshape(N, Ho, Wo, Cout)               # free reshape back to NHWC


def down_conv(x_nchw, w_oihw, gamma, beta, running_mean, running_var,
              eps=1e-5, block_n=None):
    """PyTorch-facing NCHW adapter: (N,Cin,H,W) -> (N,Cout,H//2,W//2).

    NOTE: in a full NHWC model these two transposes disappear; they exist only
    to match the PyTorch module's layout at the boundary.
    """
    x_nhwc = jnp.transpose(x_nchw, (0, 2, 3, 1))
    out_nhwc = down_conv_nhwc(x_nhwc, w_oihw, gamma, beta, running_mean,
                              running_var, eps=eps, block_n=block_n)
    return jnp.transpose(out_nhwc, (0, 3, 1, 2)).astype(x_nchw.dtype)


def _reference(x_nchw, w_oihw, gamma, beta, mean, var, eps=1e-5):
    """Pure-f32 JAX reference mirroring the PyTorch forward exactly."""
    y = lax.conv_general_dilated(
        x_nchw.astype(jnp.float32), w_oihw.astype(jnp.float32),
        window_strides=(1, 1), padding=((1, 1), (1, 1)),
        dimension_numbers=("NCHW", "OIHW", "NCHW"))
    scale = (gamma / jnp.sqrt(var + eps)).reshape(1, -1, 1, 1)
    bias = (beta - mean * gamma / jnp.sqrt(var + eps)).reshape(1, -1, 1, 1)
    y = jnp.maximum(y * scale + bias, 0.0)
    y = lax.reduce_window(y, -jnp.inf, lax.max,
                          (1, 1, 2, 2), (1, 1, 2, 2), "VALID")
    return y


if __name__ == "__main__":
    key = jax.random.PRNGKey(0)
    k_x, k_w, k_g, k_b, k_m, k_v = jax.random.split(key, 6)

    N, Cin, Cout, H, W = 4, 4, 8, 16, 16

    x = jax.random.normal(k_x, (N, Cin, H, W), dtype=jnp.float32)
    w = 0.1 * jax.random.normal(k_w, (Cout, Cin, 3, 3), dtype=jnp.float32)
    gamma = 1.0 + 0.1 * jax.random.normal(k_g, (Cout,), dtype=jnp.float32)
    beta = 0.1 * jax.random.normal(k_b, (Cout,), dtype=jnp.float32)
    running_mean = 0.05 * jax.random.normal(k_m, (Cout,), dtype=jnp.float32)
    running_var = 1.0 + 0.1 * jnp.abs(
        jax.random.normal(k_v, (Cout,), dtype=jnp.float32))

    # Default heuristic picks block_n=2 -> two images per step, 2-step grid.
    out = down_conv(x, w, gamma, beta, running_mean, running_var)
    out = jax.block_until_ready(out)

    ref = _reference(x, w, gamma, beta, running_mean, running_var)
    assert out.shape == (N, Cout, H // 2, W // 2)
    # Tolerance covers bf16 activation/weight quantization inside the kernel.
    assert jnp.allclose(out, ref, rtol=2e-2, atol=2e-2)

    print("KERNEL_OK")
</pallas_src>

<mosaic_0001>
module attributes {stable_mosaic.version = 11 : i64} {
  func.func @_downconv_kernel(%arg0: i32, %arg1: memref<2x16x64xf32, #tpu.memory_space<vmem>>, %arg2: memref<3x64x128xbf16, #tpu.memory_space<vmem>>, %arg3: memref<1x128xf32, #tpu.memory_space<vmem>>, %arg4: memref<2x8x64xf32, #tpu.memory_space<vmem>>, %arg5: memref<2x18x64xbf16, #tpu.memory_space<vmem>>) attributes {dimension_semantics = [#tpu.dimension_semantics<parallel>], iteration_bounds = array<i64: 2>, scalar_prefetch = 0 : i64, scratch_operands = 1 : i64, tpu.core_type = #tpu.core_type<tc>, window_params = [{transform_indices = @transform_0, window_bounds = array<i64: 2, 16, 64>}, {pipeline_mode = #tpu.pipeline_mode<synchronous>, transform_indices = @transform_1, window_bounds = array<i64: 3, 64, 128>}, {pipeline_mode = #tpu.pipeline_mode<synchronous>, transform_indices = @transform_2, window_bounds = array<i64: 1, 128>}, {transform_indices = @transform_3, window_bounds = array<i64: 2, 8, 64>}]} {
    %cst = arith.constant 0.000000e+00 : bf16
    %0 = vector.broadcast %cst : bf16 to vector<2x1x64xbf16>
    %c0 = arith.constant 0 : index
    %c0_0 = arith.constant 0 : index
    %c0_1 = arith.constant 0 : index
    %1 = vector.load %arg5[%c0, %c0_0, %c0_1] : memref<2x18x64xbf16, #tpu.memory_space<vmem>>, vector<2x1x64xbf16>
    tpu.vector_store %arg5[%c0, %c0_0, %c0_1], %0 {strides = array<i32>} : memref<2x18x64xbf16, #tpu.memory_space<vmem>>, vector<2x1x64xbf16>,
    %c0_2 = arith.constant 0 : index
    %c17 = arith.constant 17 : index
    %c0_3 = arith.constant 0 : index
    %2 = vector.load %arg5[%c0_2, %c17, %c0_3] : memref<2x18x64xbf16, #tpu.memory_space<vmem>>, vector<2x1x64xbf16>
    tpu.vector_store %arg5[%c0_2, %c17, %c0_3], %0 {strides = array<i32>} : memref<2x18x64xbf16, #tpu.memory_space<vmem>>, vector<2x1x64xbf16>,
    %c0_4 = arith.constant 0 : index
    %c0_5 = arith.constant 0 : index
    %c0_6 = arith.constant 0 : index
    %3 = vector.load %arg1[%c0_4, %c0_5, %c0_6] : memref<2x16x64xf32, #tpu.memory_space<vmem>>, vector<2x16x64xf32>
    %4 = arith.truncf %3 : vector<2x16x64xf32> to vector<2x16x64xbf16>
    %c0_7 = arith.constant 0 : index
    %c1 = arith.constant 1 : index
    %c0_8 = arith.constant 0 : index
    %5 = vector.load %arg5[%c0_7, %c1, %c0_8] : memref<2x18x64xbf16, #tpu.memory_space<vmem>>, vector<2x16x64xbf16>
    tpu.vector_store %arg5[%c0_7, %c1, %c0_8], %4 {strides = array<i32>} : memref<2x18x64xbf16, #tpu.memory_space<vmem>>, vector<2x16x64xbf16>,
    %cst_9 = arith.constant 0.000000e+00 : f32
    %6 = vector.broadcast %cst_9 : f32 to vector<32x128xf32>
    %c0_10 = arith.constant 0 : index
    %c0_11 = arith.constant 0 : index
    %c0_12 = arith.constant 0 : index
    %7 = vector.load %arg5[%c0_10, %c0_11, %c0_12] : memref<2x18x64xbf16, #tpu.memory_space<vmem>>, vector<2x16x64xbf16>
    %8 = vector.shape_cast %7 : vector<2x16x64xbf16> to vector<32x64xbf16>
    %c0_13 = arith.constant 0 : index
    %c0_14 = arith.constant 0 : index
    %c0_15 = arith.constant 0 : index
    %9 = vector.load %arg2[%c0_13, %c0_14, %c0_15] : memref<3x64x128xbf16, #tpu.memory_space<vmem>>, vector<1x64x128xbf16>
    %10 = vector.shape_cast %9 : vector<1x64x128xbf16> to vector<64x128xbf16>
    %cst_16 = arith.constant dense<0.000000e+00> : vector<32x128xf32>
    %11 = tpu.matmul %8, %10, %cst_16 {dimension_numbers = #tpu.dot_dimension_numbers<[1], [0], [0], [1], [0, 0, 1, 1], [], []>} : vector<32x64xbf16>, vector<64x128xbf16>, vector<32x128xf32> -> vector<32x128xf32>
    %12 = arith.addf %6, %11 : vector<32x128xf32>
    %c0_17 = arith.constant 0 : index
    %c1_18 = arith.constant 1 : index
    %c0_19 = arith.constant 0 : index
    %13 = vector.load %arg5[%c0_17, %c1_18, %c0_19] : memref<2x18x64xbf16, #tpu.memory_space<vmem>>, vector<2x16x64xbf16>
    %14 = vector.shape_cast %13 : vector<2x16x64xbf16> to vector<32x64xbf16>
    %c1_20 = arith.constant 1 : index
    %c0_21 = arith.constant 0 : index
    %c0_22 = arith.constant 0 : index
    %15 = vector.load %arg2[%c1_20, %c0_21, %c0_22] : memref<3x64x128xbf16, #tpu.memory_space<vmem>>, vector<1x64x128xbf16>
    %16 = vector.shape_cast %15 : vector<1x64x128xbf16> to vector<64x128xbf16>
    %cst_23 = arith.constant dense<0.000000e+00> : vector<32x128xf32>
    %17 = tpu.matmul %14, %16, %cst_23 {dimension_numbers = #tpu.dot_dimension_numbers<[1], [0], [0], [1], [0, 0, 1, 1], [], []>} : vector<32x64xbf16>, vector<64x128xbf16>, vector<32x128xf32> -> vector<32x128xf32>
    %18 = arith.addf %12, %17 : vector<32x128xf32>
    %c0_24 = arith.constant 0 : index
    %c2 = arith.constant 2 : index
    %c0_25 = arith.constant 0 : index
    %19 = vector.load %arg5[%c0_24, %c2, %c0_25] : memref<2x18x64xbf16, #tpu.memory_space<vmem>>, vector<2x16x64xbf16>
    %20 = vector.shape_cast %19 : vector<2x16x64xbf16> to vector<32x64xbf16>
    %c2_26 = arith.constant 2 : index
    %c0_27 = arith.constant 0 : index
    %c0_28 = arith.constant 0 : index
    %21 = vector.load %arg2[%c2_26, %c0_27, %c0_28] : memref<3x64x128xbf16, #tpu.memory_space<vmem>>, vector<1x64x128xbf16>
    %22 = vector.shape_cast %21 : vector<1x64x128xbf16> to vector<64x128xbf16>
    %cst_29 = arith.constant dense<0.000000e+00> : vector<32x128xf32>
    %23 = tpu.matmul %20, %22, %cst_29 {dimension_numbers = #tpu.dot_dimension_numbers<[1], [0], [0], [1], [0, 0, 1, 1], [], []>} : vector<32x64xbf16>, vector<64x128xbf16>, vector<32x128xf32> -> vector<32x128xf32>
    %24 = arith.addf %18, %23 : vector<32x128xf32>
    %c0_30 = arith.constant 0 : index
    %c0_31 = arith.constant 0 : index
    %25 = vector.load %arg3[%c0_30, %c0_31] : memref<1x128xf32, #tpu.memory_space<vmem>>, vector<1x128xf32>
    %26 = vector.broadcast %25 : vector<1x128xf32> to vector<32x128xf32>
    %27 = arith.addf %24, %26 : vector<32x128xf32>
    %cst_32 = arith.constant 0.000000e+00 : f32
    %28 = vector.broadcast %cst_32 : f32 to vector<32x128xf32>
    %29 = arith.maximumf %27, %28 : vector<32x128xf32>
    %30 = vector.extract_strided_slice %29 {offsets = [0, 0], sizes = [32, 64], strides = [1, 1]} : vector<32x128xf32> to vector<32x64xf32>
    %31 = vector.extract_strided_slice %29 {offsets = [0, 64], sizes = [32, 64], strides = [1, 1]} : vector<32x128xf32> to vector<32x64xf32>
    %32 = arith.maximumf %30, %31 : vector<32x64xf32>
    %33 = vector.shape_cast %32 : vector<32x64xf32> to vector<2x8x2x64xf32>
    %cst_33 = arith.constant dense<0xFF800000> : vector<2x8x64xf32>
    %34 = vector.multi_reduction <maximumf>, %33, %cst_33 [2] : vector<2x8x2x64xf32> to vector<2x8x64xf32>
    %c0_34 = arith.constant 0 : index
    %c0_35 = arith.constant 0 : index
    %c0_36 = arith.constant 0 : index
    %35 = vector.load %arg4[%c0_34, %c0_35, %c0_36] : memref<2x8x64xf32, #tpu.memory_space<vmem>>, vector<2x8x64xf32>
    tpu.vector_store %arg4[%c0_34, %c0_35, %c0_36], %34 {strides = array<i32>} : memref<2x8x64xf32, #tpu.memory_space<vmem>>, vector<2x8x64xf32>,
    return
  }
  func.func @transform_0(%arg0: i32) -> (i32, i32, i32) {
    %c0_i32 = arith.constant 0 : i32
    %c0_i32_0 = arith.constant 0 : i32
    %c0_i32_1 = arith.constant 0 : i32
    return %arg0, %c0_i32, %c0_i32_0 : i32, i32, i32
  }
  func.func @transform_1(%arg0: i32) -> (i32, i32, i32) {
    %c0_i32 = arith.constant 0 : i32
    %c0_i32_0 = arith.constant 0 : i32
    %c0_i32_1 = arith.constant 0 : i32
    %c0_i32_2 = arith.constant 0 : i32
    return %c0_i32, %c0_i32_0, %c0_i32_1 : i32, i32, i32
  }
  func.func @transform_2(%arg0: i32) -> (i32, i32) {
    %c0_i32 = arith.constant 0 : i32
    %c0_i32_0 = arith.constant 0 : i32
    %c0_i32_1 = arith.constant 0 : i32
    return %c0_i32, %c0_i32_0 : i32, i32
  }
  func.func @transform_3(%arg0: i32) -> (i32, i32, i32) {
    %c0_i32 = arith.constant 0 : i32
    %c0_i32_0 = arith.constant 0 : i32
    %c0_i32_1 = arith.constant 0 : i32
    return %arg0, %c0_i32, %c0_i32_0 : i32, i32, i32
  }
}

</mosaic_0001>

<llo_original>
// kernel: tpu_custom_call.1
$region0: #{tpu_custom_call.1}
  #allocation0 [shape = 'u32[]', space=smem, size = 0x4, offset = 0x4, fixed_abs, tag = 'smem constant byte address 0x4 - core index']
  #allocation1 [shape = 'u32[144,128]{1,0:T(1,128)}', space=vmem, size = 0x12000, scoped, tag = 'internal scratch']
  #allocation2 [shape = 'bf16[2,18,64]{2,1,0:T(8,128)(2,1)}', space=vmem, size = 0x3000, scoped, tag = 'scratch operand']
  %s0 = inlined_call_operand.hbm [shape: f32[4,16,64], index: 0, kind: input, shape index: {}]
  %s1 = inlined_call_operand.hbm [shape: bf16[3,64,128], index: 1, kind: input, shape index: {}]
  %s2 = inlined_call_operand.vmem [shape: f32[1,128], index: 2, kind: input, shape index: {}]
  %s3 = inlined_call_operand.hbm [shape: f32[4,8,64], index: 3, kind: output, shape index: {}]
  %s4 = sld [smem:[#allocation0]]
  $region53: #{tpu_custom_call.1} parent=0
    _
  %s6 = ssub.s32 1, %s4
  %s7 = scalar_select 0, %s6, %s4
  $region1: #{tpu_custom_call.1} parent=0
    #allocation3 [shape = 'u8[32768]{0}', space=vmem, size = 0x8000, scoped, tag = 'input window, operand 0']
    #allocation4 [shape = 's32[2]{0}', space=sflag, size = 0x8, scoped, tag = 'scoped memory for tpu_custom_call.1']
    #allocation5 [shape = 's32[2]{0}', space=sflag, size = 0x8, scoped, tag = 'scoped memory for tpu_custom_call.1']
    #allocation6 [shape = 'u8[49152]{0}', space=vmem, size = 0xc000, scoped, tag = 'input window, operand 1, single buffered']
    #allocation7 [shape = 's32[1]{0}', space=sflag, size = 0x4, scoped, tag = 'scoped memory for tpu_custom_call.1']
    #allocation8 [shape = 'u8[16384]{0}', space=vmem, size = 0x4000, scoped, tag = 'output window, operand 0']
    %8 = vsyncpa [#allocation4], 0
    %s9 = scalar_lea.sflag [#allocation4], 1
    %10 = vsyncpa %s9, 0
    %11 = vsyncpa [#allocation7], 0
    %12 = vsyncpa [#allocation5], 0
    %s13 = scalar_lea.sflag [#allocation5], 1
    %14 = vsyncpa %s13, 0
    loop: start=0, step=1, limit=4
    $region2: #{tpu_custom_call.1} parent=1 // loop_pre_header
      _
    $region3: #{tpu_custom_call.1} parent=1 // loop_header
      %s16 = sphi 0, %s20
      %p17 = scmp.ge.s32.totalorder %s16, 4
      %s26 = sphi 0, %s28
      %s29 = sphi 0, %s26
      %s30 = sphi 0, %s29
      %s46 = sphi 0, %s30
      %s50 = sphi 0, %s50
      %s52 = sphi 0, %s50
      %s53 = sphi 0, %s52
      %s67 = sphi 0, %s53
      %s71 = sphi 0, %s71
      %s73 = sphi 0, %s71
      %s74 = sphi 0, %s73
      %s88 = sphi 0, %s74
      %s94 = sphi 0, %s96
      %s97 = sphi 0, %s94
      %s98 = sphi 0, %s97
      %s114 = sphi 0, %s98
    $region4: #{tpu_custom_call.1} parent=1 // loop_header_branch
      %19 = sbr.rel (%p17) target = $region8
    $region5: #{tpu_custom_call.1} parent=1 // loop_body
      %s21 = ssub.s32 %s16, 1
      %s22 = ssub.s32 %s16, 2
      %s23 = sadd.s32 %s16, 1
      %s24 = ssub.s32 %s16, %s23
      %p25 = scmp.eq.s32.totalorder %s24, 0
      %s27 = sadd.s32 %s26, 1
      %s28 = scalar_select %p25, %s26, %s27
      %p31 = pneg %p25
      %p32 = scmp.eq.s32.totalorder %s16, 1
      %p33 = por %p31, %p32
      %p34 = scmp.ne.s32.totalorder %s26, %s29
      %p35 = scmp.eq.s32.totalorder %s16, 0
      %p36 = por %p34, %p35
      %p37 = scmp.ne.s32.totalorder %s26, %s29
      %p38 = scmp.eq.s32.totalorder %s21, 1
      %p39 = por %p37, %p38
      %p40 = scmp.ne.s32.totalorder %s29, %s30
      %p41 = scmp.eq.s32.totalorder %s21, 0
      %p42 = por %p40, %p41
      %p43 = scmp.ne.s32.totalorder %s29, %s30
      %p44 = scmp.eq.s32.totalorder %s22, 1
      %p45 = por %p43, %p44
      %p47 = scmp.ne.s32.totalorder %s30, %s46
      %p48 = scmp.eq.s32.totalorder %s22, 0
      %p49 = por %p47, %p48
      %s51 = sadd.s32 %s50, 1
      %p54 = scmp.eq.s32.totalorder %s16, 1
      %p55 = scmp.ne.s32.totalorder %s50, %s52
      %p56 = scmp.eq.s32.totalorder %s16, 0
      %p57 = por %p55, %p56
      %p58 = scmp.ne.s32.totalorder %s50, %s52
      %p59 = scmp.eq.s32.totalorder %s21, 1
      %p60 = por %p58, %p59
      %p61 = scmp.ne.s32.totalorder %s52, %s53
      %p62 = scmp.eq.s32.totalorder %s21, 0
      %p63 = por %p61, %p62
      %p64 = scmp.ne.s32.totalorder %s52, %s53
      %p65 = scmp.eq.s32.totalorder %s22, 1
      %p66 = por %p64, %p65
      %p68 = scmp.ne.s32.totalorder %s53, %s67
      %p69 = scmp.eq.s32.totalorder %s22, 0
      %p70 = por %p68, %p69
      %s72 = sadd.s32 %s71, 1
      %p75 = scmp.eq.s32.totalorder %s16, 1
      %p76 = scmp.ne.s32.totalorder %s71, %s73
      %p77 = scmp.eq.s32.totalorder %s16, 0
      %p78 = por %p76, %p77
      %p79 = scmp.ne.s32.totalorder %s71, %s73
      %p80 = scmp.eq.s32.totalorder %s21, 1
      %p81 = por %p79, %p80
      %p82 = scmp.ne.s32.totalorder %s73, %s74
      %p83 = scmp.eq.s32.totalorder %s21, 0
      %p84 = por %p82, %p83
      %p85 = scmp.ne.s32.totalorder %s73, %s74
      %p86 = scmp.eq.s32.totalorder %s22, 1
      %p87 = por %p85, %p86
      %p89 = scmp.ne.s32.totalorder %s74, %s88
      %p90 = scmp.eq.s32.totalorder %s22, 0
      %p91 = por %p89, %p90
      %s92 = ssub.s32 %s16, %s23
      %p93 = scmp.eq.s32.totalorder %s92, 0
      %s95 = sadd.s32 %s94, 1
      %s96 = scalar_select %p93, %s94, %s95
      %p99 = pneg %p93
      %p100 = scmp.eq.s32.totalorder %s16, 1
      %p101 = por %p99, %p100
      %p102 = scmp.ne.s32.totalorder %s94, %s97
      %p103 = scmp.eq.s32.totalorder %s16, 0
      %p104 = por %p102, %p103
      %p105 = scmp.ne.s32.totalorder %s94, %s97
      %p106 = scmp.eq.s32.totalorder %s21, 1
      %p107 = por %p105, %p106
      %p108 = scmp.ne.s32.totalorder %s97, %s98
      %p109 = scmp.eq.s32.totalorder %s21, 0
      %p110 = por %p108, %p109
      %p111 = scmp.ne.s32.totalorder %s97, %s98
      %p112 = scmp.eq.s32.totalorder %s22, 1
      %p113 = por %p111, %p112
      %p115 = scmp.ne.s32.totalorder %s98, %s114
      %p116 = scmp.eq.s32.totalorder %s22, 0
      %p117 = por %p115, %p116
      %p118 = scmp.le.s32.totalorder 1, %s16
      %p119 = scmp.lt.s32.totalorder %s16, 3
      %p120 = pnand %p118, %p119
      %p121 = pneg %p120
      // Predicated region
      $region9: #{tpu_custom_call.1} parent=5 // pred_check
        _
      $region10: #{tpu_custom_call.1} parent=5 // pred_check_branch
        %123 = sbr.rel (%p120) target = $region12
      $region11: #{tpu_custom_call.1} parent=5 // pred_region
        %s124 = ssub.s32 %s16, 1
        // Predicated region
        $region13: #{tpu_custom_call.1} parent=11 // pred_check
          %p125 = pneg %p63
        $region14: #{tpu_custom_call.1} parent=11 // pred_check_branch
          %127 = sbr.rel (%p125) target = $region16
        $region15: #{tpu_custom_call.1} parent=11 // pred_region
          %s129 = ssub.s32 1536, 1536
          %130 = vsyncadd [#allocation7], %s129
          %s131 = sshll.u32 [#allocation6], 4
          %s132 = int_to_ptr.vmem [resolvable:$true] %s131
          %137 = dma.hbm_to_vmem [thread:$0]  %s1, 1536, %s132, [#allocation7], 64, 64, 4
        $region16: #{tpu_custom_call.1} parent=11 // pred_fallthru
          _
        // Predicated region
        $region17: #{tpu_custom_call.1} parent=11 // pred_check
          %p138 = pneg %p84
        $region18: #{tpu_custom_call.1} parent=11 // pred_check_branch
          %140 = sbr.rel (%p138) target = $region20
        $region19: #{tpu_custom_call.1} parent=11 // pred_region
          _
        $region20: #{tpu_custom_call.1} parent=11 // pred_fallthru
          _
      $region12: #{tpu_custom_call.1} parent=5 // pred_fallthru
        _
      %p141 = scmp.lt.s32.totalorder %s16, 2
      // Predicated region
      $region21: #{tpu_custom_call.1} parent=5 // pred_check
        %p142 = pneg %p141
      $region22: #{tpu_custom_call.1} parent=5 // pred_check_branch
        %144 = sbr.rel (%p142) target = $region24
      $region23: #{tpu_custom_call.1} parent=5 // pred_region
        // Predicated region
        $region25: #{tpu_custom_call.1} parent=23 // pred_check
          %p145 = pneg %p36
        $region26: #{tpu_custom_call.1} parent=23 // pred_check_branch
          %147 = sbr.rel (%p145) target = $region28
        $region27: #{tpu_custom_call.1} parent=23 // pred_region
          %s148 = sand.u32 %s26, 1
          %s149 = scalar_lea.sflag [#allocation4], %s148
          %s150 = sand.u32 %s26, 1
          %s151 = smul.addr %s150, 32
          %s152 = scalar_lea.vmem [#allocation3], %s151
          %s153 = smul.u32 2, %s16
          %s155 = ssub.s32 512, 512
          %156 = vsyncadd %s149, %s155
          %s157 = smul.addr %s153, 2
          %s158 = smul.addr %s157, 128
          %s159 = scalar_lea.hbm %s0, %s158
          %s160 = sshll.u32 %s152, 4
          %s161 = int_to_ptr.vmem [resolvable:$true] %s160
          %166 = dma.hbm_to_vmem [thread:$0]  %s159, 512, %s161, %s149, 128, 128, 8
        $region28: #{tpu_custom_call.1} parent=23 // pred_fallthru
          _
      $region24: #{tpu_custom_call.1} parent=5 // pred_fallthru
        _
      %p167 = scmp.le.s32.totalorder 1, %s16
      %p168 = scmp.lt.s32.totalorder %s16, 3
      %p169 = pnand %p167, %p168
      %p170 = pneg %p169
      // Predicated region
      $region29: #{tpu_custom_call.1} parent=5 // pred_check
        _
      $region30: #{tpu_custom_call.1} parent=5 // pred_check_branch
        %172 = sbr.rel (%p169) target = $region32
      $region31: #{tpu_custom_call.1} parent=5 // pred_region
        %s173 = ssub.s32 %s16, 1
        %s174 = sand.u32 %s29, 1
        %s175 = scalar_lea.sflag [#allocation4], %s174
        %s176 = sand.u32 %s29, 1
        %s177 = smul.addr %s176, 32
        %s178 = scalar_lea.vmem [#allocation3], %s177
        // Predicated region
        $region33: #{tpu_custom_call.1} parent=31 // pred_check
          %p179 = pneg %p42
        $region34: #{tpu_custom_call.1} parent=31 // pred_check_branch
          %181 = sbr.rel (%p179) target = $region36
        $region35: #{tpu_custom_call.1} parent=31 // pred_region
          %182 = dma.done %s175, 512
        $region36: #{tpu_custom_call.1} parent=31 // pred_fallthru
          _
        // Predicated region
        $region37: #{tpu_custom_call.1} parent=31 // pred_check
          %p183 = pneg %p63
        $region38: #{tpu_custom_call.1} parent=31 // pred_check_branch
          %185 = sbr.rel (%p183) target = $region40
        $region39: #{tpu_custom_call.1} parent=31 // pred_region
          %186 = dma.done [#allocation7], 1536
        $region40: #{tpu_custom_call.1} parent=31 // pred_fallthru
          _
        %s187 = sand.u32 %s29, 1
        %s188 = scalar_lea.sflag [#allocation4], %s187
        %s189 = sand.u32 %s29, 1
        %s190 = smul.addr %s189, 32
        %s191 = scalar_lea.vmem [#allocation3], %s190
        %p192 = pneg %p42
        %p193 = pneg %p39
        %p194 = pneg %p63
        %p195 = pneg %p60
        %p196 = pneg %p84
        %p197 = pneg %p81
        %p198 = pneg %p110
        %p199 = pneg %p107
        %s200 = sand.u32 %s97, 1
        %s201 = scalar_lea.sflag [#allocation5], %s200
        %s202 = sand.u32 %s97, 1
        %s203 = smul.addr %s202, 16
        %s204 = scalar_lea.vmem [#allocation8], %s203
        %s205 = smul.u32 2, %s21
        %s206 = smul.u32 2, %s21
        %vm208 = vcmask 516096
        %vm209 = vsmask.f32 256
        %vm210 = vmand %vm208, %vm209
        %v211 = vld [vmem:[#allocation2] sm:$0x1]
        %v212 = vsel %vm210, 0, %v211
        %213 = vst [vmem:[#allocation2] sm:$0x1] %v212
        %v214 = vld [vmem:[#allocation2 + $0xc] sm:$0x1]
        %v215 = vsel %vm210, 0, %v214
        %216 = vst [vmem:[#allocation2 + $0xc] sm:$0x1] %v215
        %vm217 = vsmask.f32 7938
        %vm218 = vmand %vm208, %vm217
        %v219 = vld [vmem:[#allocation2 + $0x8] sm:$0x1]
        %v220 = vsel %vm218, 0, %v219
        %221 = vst [vmem:[#allocation2 + $0x8] sm:$0x1] %v220
        %v222 = vld [vmem:[#allocation2 + $0x14] sm:$0x1]
        %v223 = vsel %vm218, 0, %v222
        %224 = vst [vmem:[#allocation2 + $0x14] sm:$0x1] %v223
        %v225 = vld [vmem:[%s178] sm:$0xff]
        %v226 = vld [vmem:[%s178 + $0x8] sm:$0xff]
        %v227 = vld [vmem:[%s178 + $0x10] sm:$0xff]
        %v228 = vld [vmem:[%s178 + $0x18] sm:$0xff]
        %v229 = vpack.c.bf16 %v226, %v225
        %v230 = vpack.c.bf16 %v228, %v227
        %v233 = vunpack.c.l.b16 %v229
        %v234 = vunpack.c.h.b16 %v229
        %v235 = vunpack.c.l.b16 %v230
        %v236 = vunpack.c.h.b16 %v230
        %v237 = vpack.c.b16 %v233, %v233
        %v238 = vpack.c.b16 %v234, %v234
        %v239 = vpack.c.b16 %v235, %v235
        %v240 = vpack.c.b16 %v236, %v236
        %vm241 = vsmask.f32 4368
        %vm242 = vmor %vm209, %vm241
        %v244 = vshrl.u32 %v237, 16
        %v246 = vrot.slane %v244, 7
        %v247 = vshll.u32 %v237, 16
        %v249 = vor.u32 %v246, %v247
        %v250 = vrot.slane %v246, 4
        %v252 = vshrl.u32 %v238, 16
        %v254 = vrot.slane %v252, 7
        %v255 = vshll.u32 %v238, 16
        %v257 = vor.u32 %v254, %v255
        %v258 = vsel %vm242, %v250, %v257
        %v259 = vrot.slane %v254, 4
        %v261 = vshrl.u32 %v239, 16
        %v263 = vrot.slane %v261, 7
        %v264 = vshll.u32 %v239, 16
        %v266 = vor.u32 %v263, %v264
        %v267 = vrot.slane %v263, 4
        %v269 = vshrl.u32 %v240, 16
        %v271 = vrot.slane %v269, 7
        %v272 = vshll.u32 %v240, 16
        %v274 = vor.u32 %v271, %v272
        %v275 = vsel %vm242, %v267, %v274
        %v276 = vrot.slane %v271, 4
        %vm283 = vcmask 519168
        %vm284 = vmand %vm283, %vm217
        %v285 = vld [vmem:[#allocation2] sm:$0xf]
        %v286 = vsel %vm284, %v249, %v285
        %287 = vst [vmem:[#allocation2] sm:$0xf] %v286
        %vm288 = vcmask 519168
        %289 = vst.msk [vmem:[#allocation2 + $0x4] sm:$0xf] %vm288, %v258
        %v290 = vld [vmem:[#allocation2 + $0x8] sm:$0x1]
        %v291 = vsel %vm210, %v259, %v290
        %292 = vst [vmem:[#allocation2 + $0x8] sm:$0x1] %v291
        %v293 = vld [vmem:[#allocation2 + $0xc] sm:$0xf]
        %v294 = vsel %vm284, %v266, %v293
        %295 = vst [vmem:[#allocation2 + $0xc] sm:$0xf] %v294
        %296 = vst.msk [vmem:[#allocation2 + $0x10] sm:$0xf] %vm288, %v275
        %v297 = vld [vmem:[#allocation2 + $0x14] sm:$0x1]
        %v298 = vsel %vm210, %v276, %v297
        %299 = vst [vmem:[#allocation2 + $0x14] sm:$0x1] %v298
        %v300 = vld [vmem:[#allocation2] sm:$0xf]
        %v301 = vld [vmem:[#allocation2 + $0x4] sm:$0xf]
        %v302 = vld [vmem:[#allocation2 + $0xc] sm:$0xf]
        %v303 = vld [vmem:[#allocation2 + $0x10] sm:$0xf]
        %v304 = vld [vmem:[#allocation6] sm:$0xf]
        %v305 = vld [vmem:[#allocation6 + $0x4] sm:$0xf]
        %v306 = vld [vmem:[#allocation6 + $0x8] sm:$0xf]
        %v307 = vld [vmem:[#allocation6 + $0xc] sm:$0xf]
        %v308 = vld [vmem:[#allocation6 + $0x10] sm:$0xf]
        %v309 = vld [vmem:[#allocation6 + $0x14] sm:$0xf]
        %v310 = vld [vmem:[#allocation6 + $0x18] sm:$0xf]
        %v311 = vld [vmem:[#allocation6 + $0x1c] sm:$0xf]
        %v312 = vld [vmem:[#allocation2 + $0x8] sm:$0x1]
        %v313 = vld [vmem:[#allocation2 + $0x14] sm:$0x1]
        %vm314 = vsmask.f32 3328
        %vm315 = vsmask.f32 7440
        %vm316 = vmor %vm314, %vm315
        %v318 = vshrl.u32 %v300, 16
        %v320 = vrot.slane %v318, 4
        %v321 = vshll.u32 %v300, 16
        %v323 = vrot.slane %v321, 5
        %v324 = vor.u32 %v320, %v323
        %v325 = vrot.slane %v324, 4
        %v327 = vshll.u32 %v301, 16
        %v329 = vrot.slane %v327, 5
        %v330 = vsel %vm316, %v325, %v329
        %v331 = vshrl.u32 %v301, 16
        %v333 = vrot.slane %v331, 4
        %v334 = vor.u32 %v333, %v329
        %v335 = vrot.slane %v334, 4
        %v337 = vshll.u32 %v312, 16
        %v339 = vrot.slane %v337, 5
        %v340 = vsel %vm316, %v335, %v339
        %v342 = vshrl.u32 %v302, 16
        %v344 = vrot.slane %v342, 4
        %v345 = vshll.u32 %v302, 16
        %v347 = vrot.slane %v345, 5
        %v348 = vor.u32 %v344, %v347
        %v349 = vrot.slane %v348, 4
        %v351 = vshll.u32 %v303, 16
        %v353 = vrot.slane %v351, 5
        %v354 = vsel %vm316, %v349, %v353
        %v355 = vshrl.u32 %v303, 16
        %v357 = vrot.slane %v355, 4
        %v358 = vor.u32 %v357, %v353
        %v359 = vrot.slane %v358, 4
        %v361 = vshll.u32 %v313, 16
        %v363 = vrot.slane %v361, 5
        %v364 = vsel %vm316, %v359, %v363
        %s365 = scalar_lea.vmem [#allocation6], 32
        %v366 = vld [vmem:[%s365] sm:$0xf]
        %v367 = vld [vmem:[%s365 + $0x4] sm:$0xf]
        %v368 = vld [vmem:[%s365 + $0x8] sm:$0xf]
        %v369 = vld [vmem:[%s365 + $0xc] sm:$0xf]
        %v370 = vld [vmem:[%s365 + $0x10] sm:$0xf]
        %v371 = vld [vmem:[%s365 + $0x14] sm:$0xf]
        %v372 = vld [vmem:[%s365 + $0x18] sm:$0xf]
        %v373 = vld [vmem:[%s365 + $0x1c] sm:$0xf]
        %v374 = vunpack.c.l.b16 %v330
        %v375 = vunpack.c.l.b16 %v340
        %v376 = vunpack.c.l.b16 %v354
        %v377 = vunpack.c.l.b16 %v364
        %v378 = vpack.c.b16 %v375, %v374
        %v379 = vpack.c.b16 %v377, %v376
        %v388 = vunpack.c.l.b16 %v366
        %v389 = vunpack.c.l.b16 %v367
        %v390 = vunpack.c.l.b16 %v368
        %v391 = vunpack.c.l.b16 %v369
        %v392 = vunpack.c.l.b16 %v370
        %v393 = vunpack.c.l.b16 %v371
        %v394 = vunpack.c.l.b16 %v372
        %v395 = vunpack.c.l.b16 %v373
        %v396 = vpack.c.b16 %v389, %v388
        %v397 = vpack.c.b16 %v391, %v390
        %v398 = vpack.c.b16 %v393, %v392
        %v399 = vpack.c.b16 %v395, %v394
        %vm404 = vcmask 523264
        %v406 = vsel %vm404, %v378, 0
        %v409 = vsel %vm404, %v379, 0
        %411 = vmatprep.subr.bf16.mxu0 0
        %412 = vmatpush1.bf16.msra.mxu0 %v396
        %413 = vmatprep.subr.bf16.mxu0 0
        %414 = vmatpush1.bf16.msra.mxu0 %v397
        %415 = vmatprep.subr.bf16.mxu0 0
        %416 = vmatpush1.bf16.msra.mxu0 %v398
        %417 = vmatprep.subr.bf16.mxu0 0
        %418 = vmatpush1.bf16.msra.mxu0 %v399
        %419 = vmatprep.subr.bf16.mxu0 0
        %420 = vmatpush1.bf16.msra.mxu0 0
        %421 = vmatprep.subr.bf16.mxu0 0
        %422 = vmatpush1.bf16.msra.mxu0 0
        %423 = vmatprep.subr.bf16.mxu0 0
        %424 = vmatpush1.bf16.msra.mxu0 0
        %425 = vmatprep.subr.bf16.mxu0 0
        %426 = vmatpush1.bf16.msra.mxu0 0
        %427 = vmatprep.subr.bf16.mxu0 0
        %428 = vmatpush1.bf16.msra.mxu0 0
        %429 = vmatprep.subr.bf16.mxu0 0
        %430 = vmatpush1.bf16.msra.mxu0 0
        %431 = vmatprep.subr.bf16.mxu0 0
        %432 = vmatpush1.bf16.msra.mxu0 0
        %433 = vmatprep.subr.bf16.mxu0 0
        %434 = vmatpush1.bf16.msra.mxu0 0
        %435 = vmatprep.subr.bf16.mxu0 0
        %436 = vmatpush1.bf16.msra.mxu0 0
        %437 = vmatprep.subr.bf16.mxu0 0
        %438 = vmatpush1.bf16.msra.mxu0 0
        %439 = vmatprep.subr.bf16.mxu0 0
        %440 = vmatpush1.bf16.msra.mxu0 0
        %441 = vmatprep.subr.bf16.mxu0 0
        %442 = vmatpush1.bf16.msra.mxu0 0
        %443 = vmatprep.mubr.bf16.mxu0 0
        %444 = vmatmul.mubr.bf16.gmra.mrb[0].mxu0 %v406
        %v445 = vpop.f32.mrb[0].mxu0
        %v446 = vadd.f32 0.0, %v445
        %v447 = vpop.f32.mrb[0].mxu0
        %v448 = vpop.f32.mrb[0].mxu0
        %v449 = vadd.f32 0.0, %v448
        %v450 = vpop.f32.mrb[0].mxu0
        %451 = vmatprep.mubr.bf16.mxu0 0
        %452 = vmatmul.mubr.bf16.gmra.mrb[0].mxu0 %v409
        %v453 = vpop.f32.mrb[0].mxu0
        %v454 = vadd.f32 0.0, %v453
        %v455 = vpop.f32.mrb[0].mxu0
        %v456 = vpop.f32.mrb[0].mxu0
        %v457 = vadd.f32 0.0, %v456
        %v458 = vpop.f32.mrb[0].mxu0
        %459 = vdwg.mxu0
        %v464 = vunpack.c.l.b16 %v300
        %v465 = vunpack.c.l.b16 %v301
        %v466 = vunpack.c.l.b16 %v302
        %v467 = vunpack.c.l.b16 %v303
        %v468 = vpack.c.b16 %v465, %v464
        %v469 = vpack.c.b16 %v467, %v466
        %v478 = vunpack.c.l.b16 %v304
        %v479 = vunpack.c.l.b16 %v305
        %v480 = vunpack.c.l.b16 %v306
        %v481 = vunpack.c.l.b16 %v307
        %v482 = vunpack.c.l.b16 %v308
        %v483 = vunpack.c.l.b16 %v309
        %v484 = vunpack.c.l.b16 %v310
        %v485 = vunpack.c.l.b16 %v311
        %v486 = vpack.c.b16 %v479, %v478
        %v487 = vpack.c.b16 %v481, %v480
        %v488 = vpack.c.b16 %v483, %v482
        %v489 = vpack.c.b16 %v485, %v484
        %v495 = vsel %vm404, %v468, 0
        %v498 = vsel %vm404, %v469, 0
        %500 = vmatprep.subr.bf16.mxu0 0
        %501 = vmatpush1.bf16.msra.mxu0 %v486
        %502 = vmatprep.subr.bf16.mxu0 0
        %503 = vmatpush1.bf16.msra.mxu0 %v487
        %504 = vmatprep.subr.bf16.mxu0 0
        %505 = vmatpush1.bf16.msra.mxu0 %v488
        %506 = vmatprep.subr.bf16.mxu0 0
        %507 = vmatpush1.bf16.msra.mxu0 %v489
        %508 = vmatprep.subr.bf16.mxu0 0
        %509 = vmatpush1.bf16.msra.mxu0 0
        %510 = vmatprep.subr.bf16.mxu0 0
        %511 = vmatpush1.bf16.msra.mxu0 0
        %512 = vmatprep.subr.bf16.mxu0 0
        %513 = vmatpush1.bf16.msra.mxu0 0
        %514 = vmatprep.subr.bf16.mxu0 0
        %515 = vmatpush1.bf16.msra.mxu0 0
        %516 = vmatprep.subr.bf16.mxu0 0
        %517 = vmatpush1.bf16.msra.mxu0 0
        %518 = vmatprep.subr.bf16.mxu0 0
        %519 = vmatpush1.bf16.msra.mxu0 0
        %520 = vmatprep.subr.bf16.mxu0 0
        %521 = vmatpush1.bf16.msra.mxu0 0
        %522 = vmatprep.subr.bf16.mxu0 0
        %523 = vmatpush1.bf16.msra.mxu0 0
        %524 = vmatprep.subr.bf16.mxu0 0
        %525 = vmatpush1.bf16.msra.mxu0 0
        %526 = vmatprep.subr.bf16.mxu0 0
        %527 = vmatpush1.bf16.msra.mxu0 0
        %528 = vmatprep.subr.bf16.mxu0 0
        %529 = vmatpush1.bf16.msra.mxu0 0
        %530 = vmatprep.subr.bf16.mxu0 0
        %531 = vmatpush1.bf16.msra.mxu0 0
        %532 = vmatprep.mubr.bf16.mxu0 0
        %533 = vmatmul.mubr.bf16.gmra.mrb[0].mxu0 %v495
        %v534 = vpop.f32.mrb[0].mxu0
        %v535 = vadd.f32 %v446, %v534
        %v536 = vpop.f32.mrb[0].mxu0
        %v537 = vpop.f32.mrb[0].mxu0
        %v538 = vadd.f32 %v449, %v537
        %v539 = vpop.f32.mrb[0].mxu0
        %540 = vmatprep.mubr.bf16.mxu0 0
        %541 = vmatmul.mubr.bf16.gmra.mrb[0].mxu0 %v498
        %v542 = vpop.f32.mrb[0].mxu0
        %v543 = vadd.f32 %v454, %v542
        %v544 = vpop.f32.mrb[0].mxu0
        %v545 = vpop.f32.mrb[0].mxu0
        %v546 = vadd.f32 %v457, %v545
        %v547 = vpop.f32.mrb[0].mxu0
        %548 = vdwg.mxu0
        %v549 = vld [vmem:[#allocation2] sm:$0xe]
        %v550 = vld [vmem:[#allocation2 + $0xc] sm:$0xe]
        %vm555 = vcmask 1042432
        %vm556 = vcmask 1046532
        %vm557 = vmor %vm555, %vm556
        %v558 = vrot.slane %v549, 5
        %v559 = vrot.slane %v558, 4
        %v560 = vrot.slane %v301, 5
        %v561 = vsel %vm557, %v559, %v560
        %v562 = vrot.slane %v560, 4
        %v563 = vrot.slane %v312, 5
        %v564 = vsel %vm557, %v562, %v563
        %v565 = vrot.slane %v550, 5
        %v566 = vrot.slane %v565, 4
        %v567 = vrot.slane %v303, 5
        %v568 = vsel %vm557, %v566, %v567
        %v569 = vrot.slane %v567, 4
        %v570 = vrot.slane %v313, 5
        %v571 = vsel %vm557, %v569, %v570
        %s572 = scalar_lea.vmem [#allocation6], 64
        %v573 = vld [vmem:[%s572] sm:$0xf]
        %v574 = vld [vmem:[%s572 + $0x4] sm:$0xf]
        %v575 = vld [vmem:[%s572 + $0x8] sm:$0xf]
        %v576 = vld [vmem:[%s572 + $0xc] sm:$0xf]
        %v577 = vld [vmem:[%s572 + $0x10] sm:$0xf]
        %v578 = vld [vmem:[%s572 + $0x14] sm:$0xf]
        %v579 = vld [vmem:[%s572 + $0x18] sm:$0xf]
        %v580 = vld [vmem:[%s572 + $0x1c] sm:$0xf]
        %v581 = vunpack.c.l.b16 %v561
        %v582 = vunpack.c.l.b16 %v564
        %v583 = vunpack.c.l.b16 %v568
        %v584 = vunpack.c.l.b16 %v571
        %v585 = vpack.c.b16 %v582, %v581
        %v586 = vpack.c.b16 %v584, %v583
        %v595 = vunpack.c.l.b16 %v573
        %v596 = vunpack.c.l.b16 %v574
        %v597 = vunpack.c.l.b16 %v575
        %v598 = vunpack.c.l.b16 %v576
        %v599 = vunpack.c.l.b16 %v577
        %v600 = vunpack.c.l.b16 %v578
        %v601 = vunpack.c.l.b16 %v579
        %v602 = vunpack.c.l.b16 %v580
        %v603 = vpack.c.b16 %v596, %v595
        %v604 = vpack.c.b16 %v598, %v597
        %v605 = vpack.c.b16 %v600, %v599
        %v606 = vpack.c.b16 %v602, %v601
        %v612 = vsel %vm404, %v585, 0
        %v615 = vsel %vm404, %v586, 0
        %617 = vmatprep.subr.bf16.mxu0 0
        %618 = vmatpush1.bf16.msra.mxu0 %v603
        %619 = vmatprep.subr.bf16.mxu0 0
        %620 = vmatpush1.bf16.msra.mxu0 %v604
        %621 = vmatprep.subr.bf16.mxu0 0
        %622 = vmatpush1.bf16.msra.mxu0 %v605
        %623 = vmatprep.subr.bf16.mxu0 0
        %624 = vmatpush1.bf16.msra.mxu0 %v606
        %625 = vmatprep.subr.bf16.mxu0 0
        %626 = vmatpush1.bf16.msra.mxu0 0
        %627 = vmatprep.subr.bf16.mxu0 0
        %628 = vmatpush1.bf16.msra.mxu0 0
        %629 = vmatprep.subr.bf16.mxu0 0
        %630 = vmatpush1.bf16.msra.mxu0 0
        %631 = vmatprep.subr.bf16.mxu0 0
        %632 = vmatpush1.bf16.msra.mxu0 0
        %633 = vmatprep.subr.bf16.mxu0 0
        %634 = vmatpush1.bf16.msra.mxu0 0
        %635 = vmatprep.subr.bf16.mxu0 0
        %636 = vmatpush1.bf16.msra.mxu0 0
        %637 = vmatprep.subr.bf16.mxu0 0
        %638 = vmatpush1.bf16.msra.mxu0 0
        %639 = vmatprep.subr.bf16.mxu0 0
        %640 = vmatpush1.bf16.msra.mxu0 0
        %641 = vmatprep.subr.bf16.mxu0 0
        %642 = vmatpush1.bf16.msra.mxu0 0
        %643 = vmatprep.subr.bf16.mxu0 0
        %644 = vmatpush1.bf16.msra.mxu0 0
        %645 = vmatprep.subr.bf16.mxu0 0
        %646 = vmatpush1.bf16.msra.mxu0 0
        %647 = vmatprep.subr.bf16.mxu0 0
        %648 = vmatpush1.bf16.msra.mxu0 0
        %649 = vmatprep.mubr.bf16.mxu0 0
        %650 = vmatmul.mubr.bf16.gmra.mrb[0].mxu0 %v612
        %v651 = vpop.f32.mrb[0].mxu0
        %v652 = vadd.f32 0.0, %v651
        %v653 = vpop.f32.mrb[0].mxu0
        %v654 = vpop.f32.mrb[0].mxu0
        %v655 = vadd.f32 0.0, %v654
        %v656 = vpop.f32.mrb[0].mxu0
        %657 = vmatprep.mubr.bf16.mxu0 0
        %658 = vmatmul.mubr.bf16.gmra.mrb[0].mxu0 %v615
        %v659 = vpop.f32.mrb[0].mxu0
        %v660 = vadd.f32 0.0, %v659
        %v661 = vpop.f32.mrb[0].mxu0
        %v662 = vpop.f32.mrb[0].mxu0
        %v663 = vadd.f32 0.0, %v662
        %v664 = vpop.f32.mrb[0].mxu0
        %665 = vdwg.mxu0
        %v666 = vadd.f32 %v535, %v652
        %v667 = vadd.f32 %v538, %v655
        %v668 = vadd.f32 %v543, %v660
        %v669 = vadd.f32 %v546, %v663
        %v670 = vld [vmem:[%s2] sm:$0x1]
        %v672 = vlaneseq
        %v673 = vshrl.u32 %v672, 7
        %v674 = vsub.s32 0, %v673
        %v675 = vrot.slane %v670, %v674
        %v677 = vadd.f32 %v666, %v675
        %v678 = vadd.f32 %v667, %v675
        %v679 = vadd.f32 %v668, %v675
        %v680 = vadd.f32 %v669, %v675
        %v681 = vmax.f32 %v677, 0.0
        %v682 = vmax.f32 %v678, 0.0
        %v683 = vmax.f32 %v679, 0.0
        %v684 = vmax.f32 %v680, 0.0
        %689 = vrot.lane.b32.xlu0 %v681, 64
        %v690 = vpop.permute.xlu0 %689
        %691 = vrot.lane.b32.xlu0 %v682, 64
        %v692 = vpop.permute.xlu0 %691
        %693 = vrot.lane.b32.xlu0 %v683, 64
        %v694 = vpop.permute.xlu0 %693
        %695 = vrot.lane.b32.xlu0 %v684, 64
        %v696 = vpop.permute.xlu0 %695
        %v701 = vmax.f32 %v681, %v690
        %v702 = vmax.f32 %v682, %v692
        %v703 = vmax.f32 %v683, %v694
        %v704 = vmax.f32 %v684, %v696
        %v709 = vcombine.high %v701, %v701
        %v711 = vunpack.c.l.s4 1983009808
        %v712 = vunpack.c.0.s8 %v711
        %v713 = vlaneseq
        %v714 = vshrl.u32 %v713, 7
        %v715 = vsub.s32 %v712, %v714
        %v716 = vrot.slane %v701, %v715
        %v718 = vunpack.c.l.s4 1983009808
        %v719 = vunpack.c.0.s8 %v718
        %v720 = vlaneseq
        %v721 = vshrl.u32 %v720, 7
        %v722 = vsub.s32 %v719, %v721
        %v723 = vrot.slane %v709, %v722
        %v724 = vcombine.high %v716, %v716
        %v725 = vcombine.high %v723, %v723
        %v726 = vcombine.high %v702, %v702
        %v728 = vunpack.c.l.s4 1983009808
        %v729 = vunpack.c.0.s8 %v728
        %v730 = vlaneseq
        %v731 = vshrl.u32 %v730, 7
        %v732 = vsub.s32 %v729, %v731
        %v733 = vrot.slane %v702, %v732
        %v735 = vunpack.c.l.s4 1983009808
        %v736 = vunpack.c.0.s8 %v735
        %v737 = vlaneseq
        %v738 = vshrl.u32 %v737, 7
        %v739 = vsub.s32 %v736, %v738
        %v740 = vrot.slane %v726, %v739
        %v741 = vcombine.high %v733, %v733
        %v742 = vcombine.high %v740, %v740
        %v743 = vcombine.high %v703, %v703
        %v745 = vunpack.c.l.s4 1983009808
        %v746 = vunpack.c.0.s8 %v745
        %v747 = vlaneseq
        %v748 = vshrl.u32 %v747, 7
        %v749 = vsub.s32 %v746, %v748
        %v750 = vrot.slane %v703, %v749
        %v752 = vunpack.c.l.s4 1983009808
        %v753 = vunpack.c.0.s8 %v752
        %v754 = vlaneseq
        %v755 = vshrl.u32 %v754, 7
        %v756 = vsub.s32 %v753, %v755
        %v757 = vrot.slane %v743, %v756
        %v758 = vcombine.high %v750, %v750
        %v759 = vcombine.high %v757, %v757
        %v760 = vcombine.high %v704, %v704
        %v762 = vunpack.c.l.s4 1983009808
        %v763 = vunpack.c.0.s8 %v762
        %v764 = vlaneseq
        %v765 = vshrl.u32 %v764, 7
        %v766 = vsub.s32 %v763, %v765
        %v767 = vrot.slane %v704, %v766
        %v769 = vunpack.c.l.s4 1983009808
        %v770 = vunpack.c.0.s8 %v769
        %v771 = vlaneseq
        %v772 = vshrl.u32 %v771, 7
        %v773 = vsub.s32 %v770, %v772
        %v774 = vrot.slane %v760, %v773
        %v775 = vcombine.high %v767, %v767
        %v776 = vcombine.high %v774, %v774
        %vm793 = vcmask 517120
        %v794 = vsel %vm793, %v716, -inf
        %v795 = vrot.slane %v794, 4
        %v796 = vmax.f32 %v794, %v795
        %v797 = vrot.slane %v796, 2
        %v798 = vmax.f32 %v796, %v797
        %v799 = vrot.slane %v798, 1
        %v800 = vmax.f32 %v798, %v799
        %v801 = vsel %vm793, %v724, -inf
        %v802 = vrot.slane %v801, 4
        %v803 = vmax.f32 %v801, %v802
        %v804 = vrot.slane %v803, 2
        %v805 = vmax.f32 %v803, %v804
        %v806 = vrot.slane %v805, 1
        %v807 = vmax.f32 %v805, %v806
        %v808 = vsel %vm793, %v723, -inf
        %v809 = vrot.slane %v808, 4
        %v810 = vmax.f32 %v808, %v809
        %v811 = vrot.slane %v810, 2
        %v812 = vmax.f32 %v810, %v811
        %v813 = vrot.slane %v812, 1
        %v814 = vmax.f32 %v812, %v813
        %v815 = vsel %vm793, %v725, -inf
        %v816 = vrot.slane %v815, 4
        %v817 = vmax.f32 %v815, %v816
        %v818 = vrot.slane %v817, 2
        %v819 = vmax.f32 %v817, %v818
        %v820 = vrot.slane %v819, 1
        %v821 = vmax.f32 %v819, %v820
        %v822 = vsel %vm793, %v733, -inf
        %v823 = vrot.slane %v822, 4
        %v824 = vmax.f32 %v822, %v823
        %v825 = vrot.slane %v824, 2
        %v826 = vmax.f32 %v824, %v825
        %v827 = vrot.slane %v826, 1
        %v828 = vmax.f32 %v826, %v827
        %v829 = vsel %vm793, %v741, -inf
        %v830 = vrot.slane %v829, 4
        %v831 = vmax.f32 %v829, %v830
        %v832 = vrot.slane %v831, 2
        %v833 = vmax.f32 %v831, %v832
        %v834 = vrot.slane %v833, 1
        %v835 = vmax.f32 %v833, %v834
        %v836 = vsel %vm793, %v740, -inf
        %v837 = vrot.slane %v836, 4
        %v838 = vmax.f32 %v836, %v837
        %v839 = vrot.slane %v838, 2
        %v840 = vmax.f32 %v838, %v839
        %v841 = vrot.slane %v840, 1
        %v842 = vmax.f32 %v840, %v841
        %v843 = vsel %vm793, %v742, -inf
        %v844 = vrot.slane %v843, 4
        %v845 = vmax.f32 %v843, %v844
        %v846 = vrot.slane %v845, 2
        %v847 = vmax.f32 %v845, %v846
        %v848 = vrot.slane %v847, 1
        %v849 = vmax.f32 %v847, %v848
        %v850 = vsel %vm793, %v750, -inf
        %v851 = vrot.slane %v850, 4
        %v852 = vmax.f32 %v850, %v851
        %v853 = vrot.slane %v852, 2
        %v854 = vmax.f32 %v852, %v853
        %v855 = vrot.slane %v854, 1
        %v856 = vmax.f32 %v854, %v855
        %v857 = vsel %vm793, %v758, -inf
        %v858 = vrot.slane %v857, 4
        %v859 = vmax.f32 %v857, %v858
        %v860 = vrot.slane %v859, 2
        %v861 = vmax.f32 %v859, %v860
        %v862 = vrot.slane %v861, 1
        %v863 = vmax.f32 %v861, %v862
        %v864 = vsel %vm793, %v757, -inf
        %v865 = vrot.slane %v864, 4
        %v866 = vmax.f32 %v864, %v865
        %v867 = vrot.slane %v866, 2
        %v868 = vmax.f32 %v866, %v867
        %v869 = vrot.slane %v868, 1
        %v870 = vmax.f32 %v868, %v869
        %v871 = vsel %vm793, %v759, -inf
        %v872 = vrot.slane %v871, 4
        %v873 = vmax.f32 %v871, %v872
        %v874 = vrot.slane %v873, 2
        %v875 = vmax.f32 %v873, %v874
        %v876 = vrot.slane %v875, 1
        %v877 = vmax.f32 %v875, %v876
        %v878 = vsel %vm793, %v767, -inf
        %v879 = vrot.slane %v878, 4
        %v880 = vmax.f32 %v878, %v879
        %v881 = vrot.slane %v880, 2
        %v882 = vmax.f32 %v880, %v881
        %v883 = vrot.slane %v882, 1
        %v884 = vmax.f32 %v882, %v883
        %v885 = vsel %vm793, %v775, -inf
        %v886 = vrot.slane %v885, 4
        %v887 = vmax.f32 %v885, %v886
        %v888 = vrot.slane %v887, 2
        %v889 = vmax.f32 %v887, %v888
        %v890 = vrot.slane %v889, 1
        %v891 = vmax.f32 %v889, %v890
        %v892 = vsel %vm793, %v774, -inf
        %v893 = vrot.slane %v892, 4
        %v894 = vmax.f32 %v892, %v893
        %v895 = vrot.slane %v894, 2
        %v896 = vmax.f32 %v894, %v895
        %v897 = vrot.slane %v896, 1
        %v898 = vmax.f32 %v896, %v897
        %v899 = vsel %vm793, %v776, -inf
        %v900 = vrot.slane %v899, 4
        %v901 = vmax.f32 %v899, %v900
        %v902 = vrot.slane %v901, 2
        %v903 = vmax.f32 %v901, %v902
        %v904 = vrot.slane %v903, 1
        %v905 = vmax.f32 %v903, %v904
        %vm922 = vcmask 1041409
        %v923 = vsel %vm922, %v807, %v800
        %vm924 = vcmask 1042434
        %v925 = vsel %vm924, %v814, %v923
        %vm926 = vcmask 1043459
        %v927 = vsel %vm926, %v821, %v925
        %vm928 = vcmask 1044484
        %v929 = vsel %vm928, %v828, %v927
        %vm930 = vcmask 1045509
        %v931 = vsel %vm930, %v835, %v929
        %vm932 = vcmask 1046534
        %v933 = vsel %vm932, %v842, %v931
        %vm934 = vcmask 1047559
        %v935 = vsel %vm934, %v849, %v933
        %v936 = vsel %vm922, %v863, %v856
        %v937 = vsel %vm924, %v870, %v936
        %v938 = vsel %vm926, %v877, %v937
        %v939 = vsel %vm928, %v884, %v938
        %v940 = vsel %vm930, %v891, %v939
        %v941 = vsel %vm932, %v898, %v940
        %v942 = vsel %vm934, %v905, %v941
        %945 = vst.msk [vmem:[%s204] sm:$0xff] %vm404, %v935
        %946 = vst.msk [vmem:[%s204 + $0x8] sm:$0xff] %vm404, %v942
        %s947 = sand.u32 %s97, 1
        %s948 = scalar_lea.sflag [#allocation5], %s947
        %s949 = sand.u32 %s97, 1
        %s950 = smul.addr %s949, 16
        %s951 = scalar_lea.vmem [#allocation8], %s950
        // Predicated region
        $region41: #{tpu_custom_call.1} parent=31 // pred_check
          %p952 = pneg %p107
        $region42: #{tpu_custom_call.1} parent=31 // pred_check_branch
          %954 = sbr.rel (%p952) target = $region44
        $region43: #{tpu_custom_call.1} parent=31 // pred_region
          %s955 = smul.u32 2, %s21
          %s957 = ssub.s32 256, 256
          %958 = vsyncadd %s948, %s957
          %s959 = smul.addr %s955, 128
          %s960 = scalar_lea.hbm %s3, %s959
          %s961 = sshll.u32 %s951, 4
          %s962 = int_to_ptr.vmem [resolvable:$true] %s961
          %967 = dma.vmem_to_hbm [thread:$0]  %s962, 256, %s960, %s948, 128, 128, 8
        $region44: #{tpu_custom_call.1} parent=31 // pred_fallthru
          _
      $region32: #{tpu_custom_call.1} parent=5 // pred_fallthru
        _
      %p968 = scmp.le.s32.totalorder 2, %s16
      // Predicated region
      $region45: #{tpu_custom_call.1} parent=5 // pred_check
        %p969 = pneg %p968
      $region46: #{tpu_custom_call.1} parent=5 // pred_check_branch
        %971 = sbr.rel (%p969) target = $region48
      $region47: #{tpu_custom_call.1} parent=5 // pred_region
        %s972 = ssub.s32 %s16, 2
        // Predicated region
        $region49: #{tpu_custom_call.1} parent=47 // pred_check
          %p973 = pneg %p113
        $region50: #{tpu_custom_call.1} parent=47 // pred_check_branch
          %975 = sbr.rel (%p973) target = $region52
        $region51: #{tpu_custom_call.1} parent=47 // pred_region
          %s976 = sand.u32 %s98, 1
          %s977 = scalar_lea.sflag [#allocation5], %s976
          %s978 = sand.u32 %s98, 1
          %s979 = smul.addr %s978, 16
          %s980 = scalar_lea.vmem [#allocation8], %s979
          %981 = dma.done %s977, 256
        $region52: #{tpu_custom_call.1} parent=47 // pred_fallthru
          _
      $region48: #{tpu_custom_call.1} parent=5 // pred_fallthru
        _
    $region6: #{tpu_custom_call.1} parent=1 // loop_footer
      %s20 = sadd.s32 1, %s16
    $region7: #{tpu_custom_call.1} parent=1 // loop_footer_branch
      %15 = sbr.rel target = $region3
    $region8: #{tpu_custom_call.1} parent=1 // loop_exit
      _
    %982 = vsyncpa [#allocation4], 1
    %s983 = scalar_lea.sflag [#allocation4], 1
    %984 = vsyncpa %s983, 1
    %985 = vsyncpa [#allocation7], 1
    %986 = vsyncpa [#allocation5], 1
    %s987 = scalar_lea.sflag [#allocation5], 1
    %988 = vsyncpa %s987, 1

</llo_original>
